<compile_context>
chip_gen: v7x
topology: tpu7x:2x2x1
jax: 0.10.0
libtpu: 0.0.40
codegen_flags: <defaults>
</compile_context>

<pallas_src>
import math

import jax
import jax.numpy as jnp
from jax.experimental import pallas as pl
from jax.experimental.pallas import tpu as pltpu


# ----------------------------------------------------------------------------
# Kernel: one wide matmul + bias per batch tile.
# ----------------------------------------------------------------------------
def irm_unfolder_kernel(lat_ref, w_ref, b_ref, out_ref):
    # lat_ref : (TM, L)      batch tile
    # w_ref   : (L, E*L)     composed per-branch weights, concat on out dim
    # b_ref   : (1, E*L)     composed per-branch biases, concatenated
    # out_ref : (TM, E*L)
    out_ref[...] = (
        jnp.dot(lat_ref[...], w_ref[...], preferred_element_type=jnp.float32)
        + b_ref[...]
    ).astype(out_ref.dtype)


# ----------------------------------------------------------------------------
# Wrapper
# ----------------------------------------------------------------------------
def _round_up(x, m):
    return ((x + m - 1) // m) * m


def _choose_tm(n, target=1024):
    """Batch tile: multiple of 8, capped at `target`, and at most ~n/2 so the
    grid has >=2 steps (lets v7x megacore split the batch)."""
    half = _round_up(max(pl.cdiv(n, 2), 8), 8)
    return max(8, min(target, half))


def irm_unfolder(lat, w_total, b_total, *, target_tm=1024):
    n, lat_size = lat.shape
    el = w_total.shape[1]                      # exp_factor * lat_size

    tm = _choose_tm(n, target_tm)
    n_pad = _round_up(n, tm)
    lat_in = lat if n_pad == n else jnp.pad(lat, ((0, n_pad - n), (0, 0)))
    grid = (n_pad // tm,)

    out = pl.pallas_call(
        irm_unfolder_kernel,
        out_shape=jax.ShapeDtypeStruct((n_pad, el), jnp.float32),
        grid_spec=pltpu.PrefetchScalarGridSpec(
            num_scalar_prefetch=0,
            grid=grid,
            in_specs=[
                pl.BlockSpec((tm, lat_size), lambda i: (i, 0)),  # batch tile
                pl.BlockSpec((lat_size, el), lambda i: (0, 0)),  # resident weight
                pl.BlockSpec((1, el), lambda i: (0, 0)),         # resident bias
            ],
            out_specs=pl.BlockSpec((tm, el), lambda i: (i, 0)),
        ),
        compiler_params=pltpu.CompilerParams(
            dimension_semantics=("parallel",),
            vmem_limit_bytes=32 * 1024 * 1024,
        ),
    )(lat_in, w_total, b_total)

    return out if n_pad == n else out[:n]


# ----------------------------------------------------------------------------
# Parameters (nn.Linear-style init, weights stored (in, out)) and host packing
# ----------------------------------------------------------------------------
def make_params(key, lat_size, exp_factor, n_layers=3):
    """params[i][l] = (W, b) of the l-th Linear of branch i."""
    bound = 1.0 / math.sqrt(lat_size)
    params = []
    for _ in range(exp_factor):
        layers = []
        for _ in range(n_layers):
            key, kw, kb = jax.random.split(key, 3)
            w = jax.random.uniform(kw, (lat_size, lat_size), jnp.float32, -bound, bound)
            b = jax.random.uniform(kb, (lat_size,), jnp.float32, -bound, bound)
            layers.append((w, b))
        params.append(layers)
    return params


def pack_params(params):
    """Compose each branch's affine chain and concat across branches.
    Forward-only: composition preserves the forward value but changes the
    gradient parameterization (wrap in a custom VJP if training is needed)."""
    lat_size = params[0][0][0].shape[0]
    w_cols, b_cols = [], []
    for layers in params:
        w = jnp.eye(lat_size, dtype=jnp.float32)
        b = jnp.zeros((lat_size,), jnp.float32)
        for wl, bl in layers:
            w = w @ wl
            b = b @ wl + bl
        w_cols.append(w)
        b_cols.append(b)
    w_total = jnp.concatenate(w_cols, axis=1)          # (L, E*L)
    b_total = jnp.concatenate(b_cols)[None, :]          # (1, E*L)
    return w_total, b_total


# ----------------------------------------------------------------------------
# Pure-JAX reference (mirrors the PyTorch forward branch-by-branch, layer-by-layer)
# ----------------------------------------------------------------------------
def irm_unfolder_ref(lat, params):
    outs = []
    for layers in params:
        x = lat
        for w, b in layers:
            x = x @ w + b
        outs.append(x)
    return jnp.concatenate(outs, axis=1)


# ----------------------------------------------------------------------------
# Demo / self-test
# ----------------------------------------------------------------------------
if __name__ == "__main__":
    lat_size, exp_factor, n_layers = 32, 8, 3

    key = jax.random.PRNGKey(0)
    k_lat, k_lat2, k_par = jax.random.split(key, 3)
    params = make_params(k_par, lat_size, exp_factor, n_layers)
    w_total, b_total = pack_params(params)

    # Main test: batch = 32.
    lat = jax.random.normal(k_lat, (32, lat_size), jnp.float32)
    out = irm_unfolder(lat, w_total, b_total)
    jax.block_until_ready(out)
    ref = irm_unfolder_ref(lat, params)
    assert out.shape == (32, exp_factor * lat_size)
    assert jnp.allclose(out, ref, atol=2e-4, rtol=2e-4)

    # Ragged-batch test: exercises host-side padding + output slice.
    lat2 = jax.random.normal(k_lat2, (37, lat_size), jnp.float32)
    out2 = irm_unfolder(lat2, w_total, b_total)
    jax.block_until_ready(out2)
    ref2 = irm_unfolder_ref(lat2, params)
    assert out2.shape == (37, exp_factor * lat_size)
    assert jnp.allclose(out2, ref2, atol=2e-4, rtol=2e-4)

    print("KERNEL_OK")
</pallas_src>

<mosaic_0001>
module attributes {stable_mosaic.version = 11 : i64} {
  func.func @irm_unfolder_kernel(%arg0: i32, %arg1: memref<16x32xf32, #tpu.memory_space<vmem>>, %arg2: memref<32x256xf32, #tpu.memory_space<vmem>>, %arg3: memref<1x256xf32, #tpu.memory_space<vmem>>, %arg4: memref<16x256xf32, #tpu.memory_space<vmem>>) attributes {dimension_semantics = [#tpu.dimension_semantics<parallel>], iteration_bounds = array<i64: 2>, scalar_prefetch = 0 : i64, scratch_operands = 0 : i64, tpu.core_type = #tpu.core_type<tc>, window_params = [{transform_indices = @transform_0, window_bounds = array<i64: 16, 32>}, {pipeline_mode = #tpu.pipeline_mode<synchronous>, transform_indices = @transform_1, window_bounds = array<i64: 32, 256>}, {pipeline_mode = #tpu.pipeline_mode<synchronous>, transform_indices = @transform_2, window_bounds = array<i64: 1, 256>}, {transform_indices = @transform_3, window_bounds = array<i64: 16, 256>}]} {
    %c0 = arith.constant 0 : index
    %c0_0 = arith.constant 0 : index
    %0 = vector.load %arg1[%c0, %c0_0] : memref<16x32xf32, #tpu.memory_space<vmem>>, vector<16x32xf32>
    %c0_1 = arith.constant 0 : index
    %c0_2 = arith.constant 0 : index
    %1 = vector.load %arg2[%c0_1, %c0_2] : memref<32x256xf32, #tpu.memory_space<vmem>>, vector<32x256xf32>
    %cst = arith.constant dense<0.000000e+00> : vector<16x256xf32>
    %2 = tpu.matmul %0, %1, %cst {dimension_numbers = #tpu.dot_dimension_numbers<[1], [0], [0], [1], [0, 0, 1, 1], [], []>} : vector<16x32xf32>, vector<32x256xf32>, vector<16x256xf32> -> vector<16x256xf32>
    %c0_3 = arith.constant 0 : index
    %c0_4 = arith.constant 0 : index
    %3 = vector.load %arg3[%c0_3, %c0_4] : memref<1x256xf32, #tpu.memory_space<vmem>>, vector<1x256xf32>
    %4 = vector.broadcast %3 : vector<1x256xf32> to vector<16x256xf32>
    %5 = arith.addf %2, %4 : vector<16x256xf32>
    %c0_5 = arith.constant 0 : index
    %c0_6 = arith.constant 0 : index
    %6 = vector.load %arg4[%c0_5, %c0_6] : memref<16x256xf32, #tpu.memory_space<vmem>>, vector<16x256xf32>
    tpu.vector_store %arg4[%c0_5, %c0_6], %5 {strides = array<i32>} : memref<16x256xf32, #tpu.memory_space<vmem>>, vector<16x256xf32>,
    return
  }
  func.func @transform_0(%arg0: i32) -> (i32, i32) {
    %c0_i32 = arith.constant 0 : i32
    %c0_i32_0 = arith.constant 0 : i32
    return %arg0, %c0_i32 : i32, i32
  }
  func.func @transform_1(%arg0: i32) -> (i32, i32) {
    %c0_i32 = arith.constant 0 : i32
    %c0_i32_0 = arith.constant 0 : i32
    %c0_i32_1 = arith.constant 0 : i32
    return %c0_i32, %c0_i32_0 : i32, i32
  }
  func.func @transform_2(%arg0: i32) -> (i32, i32) {
    %c0_i32 = arith.constant 0 : i32
    %c0_i32_0 = arith.constant 0 : i32
    %c0_i32_1 = arith.constant 0 : i32
    return %c0_i32, %c0_i32_0 : i32, i32
  }
  func.func @transform_3(%arg0: i32) -> (i32, i32) {
    %c0_i32 = arith.constant 0 : i32
    %c0_i32_0 = arith.constant 0 : i32
    return %arg0, %c0_i32 : i32, i32
  }
}

</mosaic_0001>

<llo_original>
// kernel: tpu_custom_call.1
$region0: #{tpu_custom_call.1}
  #allocation0 [shape = 'u32[]', space=smem, size = 0x4, offset = 0x4, fixed_abs, tag = 'smem constant byte address 0x4 - core index']
  #allocation1 [shape = 'u32[144,128]{1,0:T(1,128)}', space=vmem, size = 0x12000, scoped, tag = 'internal scratch']
  %s0 = inlined_call_operand.hbm [shape: f32[32,32], index: 0, kind: input, shape index: {}]
  %s1 = inlined_call_operand.hbm [shape: f32[32,256], index: 1, kind: input, shape index: {}]
  %s2 = inlined_call_operand.vmem [shape: f32[1,256], index: 2, kind: input, shape index: {}]
  %s3 = inlined_call_operand.hbm [shape: f32[32,256], index: 3, kind: output, shape index: {}]
  %s4 = sld [smem:[#allocation0]]
  $region53: #{tpu_custom_call.1} parent=0
    _
  %s6 = ssub.s32 1, %s4
  %s7 = scalar_select 0, %s6, %s4
  $region1: #{tpu_custom_call.1} parent=0
    #allocation2 [shape = 'u8[16384]{0}', space=vmem, size = 0x4000, scoped, tag = 'input window, operand 0']
    #allocation3 [shape = 's32[2]{0}', space=sflag, size = 0x8, scoped, tag = 'scoped memory for tpu_custom_call.1']
    #allocation4 [shape = 's32[2]{0}', space=sflag, size = 0x8, scoped, tag = 'scoped memory for tpu_custom_call.1']
    #allocation5 [shape = 'u8[32768]{0}', space=vmem, size = 0x8000, scoped, tag = 'input window, operand 1, single buffered']
    #allocation6 [shape = 's32[1]{0}', space=sflag, size = 0x4, scoped, tag = 'scoped memory for tpu_custom_call.1']
    #allocation7 [shape = 'u8[32768]{0}', space=vmem, size = 0x8000, scoped, tag = 'output window, operand 0']
    %8 = vsyncpa [#allocation3], 0
    %s9 = scalar_lea.sflag [#allocation3], 1
    %10 = vsyncpa %s9, 0
    %11 = vsyncpa [#allocation6], 0
    %12 = vsyncpa [#allocation4], 0
    %s13 = scalar_lea.sflag [#allocation4], 1
    %14 = vsyncpa %s13, 0
    loop: start=0, step=1, limit=4
    $region2: #{tpu_custom_call.1} parent=1 // loop_pre_header
      _
    $region3: #{tpu_custom_call.1} parent=1 // loop_header
      %s16 = sphi 0, %s20
      %p17 = scmp.ge.s32.totalorder %s16, 4
      %s26 = sphi 0, %s28
      %s29 = sphi 0, %s26
      %s30 = sphi 0, %s29
      %s46 = sphi 0, %s30
      %s50 = sphi 0, %s50
      %s52 = sphi 0, %s50
      %s53 = sphi 0, %s52
      %s67 = sphi 0, %s53
      %s71 = sphi 0, %s71
      %s73 = sphi 0, %s71
      %s74 = sphi 0, %s73
      %s88 = sphi 0, %s74
      %s94 = sphi 0, %s96
      %s97 = sphi 0, %s94
      %s98 = sphi 0, %s97
      %s114 = sphi 0, %s98
    $region4: #{tpu_custom_call.1} parent=1 // loop_header_branch
      %19 = sbr.rel (%p17) target = $region8
    $region5: #{tpu_custom_call.1} parent=1 // loop_body
      %s21 = ssub.s32 %s16, 1
      %s22 = ssub.s32 %s16, 2
      %s23 = sadd.s32 %s16, 1
      %s24 = ssub.s32 %s16, %s23
      %p25 = scmp.eq.s32.totalorder %s24, 0
      %s27 = sadd.s32 %s26, 1
      %s28 = scalar_select %p25, %s26, %s27
      %p31 = pneg %p25
      %p32 = scmp.eq.s32.totalorder %s16, 1
      %p33 = por %p31, %p32
      %p34 = scmp.ne.s32.totalorder %s26, %s29
      %p35 = scmp.eq.s32.totalorder %s16, 0
      %p36 = por %p34, %p35
      %p37 = scmp.ne.s32.totalorder %s26, %s29
      %p38 = scmp.eq.s32.totalorder %s21, 1
      %p39 = por %p37, %p38
      %p40 = scmp.ne.s32.totalorder %s29, %s30
      %p41 = scmp.eq.s32.totalorder %s21, 0
      %p42 = por %p40, %p41
      %p43 = scmp.ne.s32.totalorder %s29, %s30
      %p44 = scmp.eq.s32.totalorder %s22, 1
      %p45 = por %p43, %p44
      %p47 = scmp.ne.s32.totalorder %s30, %s46
      %p48 = scmp.eq.s32.totalorder %s22, 0
      %p49 = por %p47, %p48
      %s51 = sadd.s32 %s50, 1
      %p54 = scmp.eq.s32.totalorder %s16, 1
      %p55 = scmp.ne.s32.totalorder %s50, %s52
      %p56 = scmp.eq.s32.totalorder %s16, 0
      %p57 = por %p55, %p56
      %p58 = scmp.ne.s32.totalorder %s50, %s52
      %p59 = scmp.eq.s32.totalorder %s21, 1
      %p60 = por %p58, %p59
      %p61 = scmp.ne.s32.totalorder %s52, %s53
      %p62 = scmp.eq.s32.totalorder %s21, 0
      %p63 = por %p61, %p62
      %p64 = scmp.ne.s32.totalorder %s52, %s53
      %p65 = scmp.eq.s32.totalorder %s22, 1
      %p66 = por %p64, %p65
      %p68 = scmp.ne.s32.totalorder %s53, %s67
      %p69 = scmp.eq.s32.totalorder %s22, 0
      %p70 = por %p68, %p69
      %s72 = sadd.s32 %s71, 1
      %p75 = scmp.eq.s32.totalorder %s16, 1
      %p76 = scmp.ne.s32.totalorder %s71, %s73
      %p77 = scmp.eq.s32.totalorder %s16, 0
      %p78 = por %p76, %p77
      %p79 = scmp.ne.s32.totalorder %s71, %s73
      %p80 = scmp.eq.s32.totalorder %s21, 1
      %p81 = por %p79, %p80
      %p82 = scmp.ne.s32.totalorder %s73, %s74
      %p83 = scmp.eq.s32.totalorder %s21, 0
      %p84 = por %p82, %p83
      %p85 = scmp.ne.s32.totalorder %s73, %s74
      %p86 = scmp.eq.s32.totalorder %s22, 1
      %p87 = por %p85, %p86
      %p89 = scmp.ne.s32.totalorder %s74, %s88
      %p90 = scmp.eq.s32.totalorder %s22, 0
      %p91 = por %p89, %p90
      %s92 = ssub.s32 %s16, %s23
      %p93 = scmp.eq.s32.totalorder %s92, 0
      %s95 = sadd.s32 %s94, 1
      %s96 = scalar_select %p93, %s94, %s95
      %p99 = pneg %p93
      %p100 = scmp.eq.s32.totalorder %s16, 1
      %p101 = por %p99, %p100
      %p102 = scmp.ne.s32.totalorder %s94, %s97
      %p103 = scmp.eq.s32.totalorder %s16, 0
      %p104 = por %p102, %p103
      %p105 = scmp.ne.s32.totalorder %s94, %s97
      %p106 = scmp.eq.s32.totalorder %s21, 1
      %p107 = por %p105, %p106
      %p108 = scmp.ne.s32.totalorder %s97, %s98
      %p109 = scmp.eq.s32.totalorder %s21, 0
      %p110 = por %p108, %p109
      %p111 = scmp.ne.s32.totalorder %s97, %s98
      %p112 = scmp.eq.s32.totalorder %s22, 1
      %p113 = por %p111, %p112
      %p115 = scmp.ne.s32.totalorder %s98, %s114
      %p116 = scmp.eq.s32.totalorder %s22, 0
      %p117 = por %p115, %p116
      %p118 = scmp.le.s32.totalorder 1, %s16
      %p119 = scmp.lt.s32.totalorder %s16, 3
      %p120 = pnand %p118, %p119
      %p121 = pneg %p120
      // Predicated region
      $region9: #{tpu_custom_call.1} parent=5 // pred_check
        _
      $region10: #{tpu_custom_call.1} parent=5 // pred_check_branch
        %123 = sbr.rel (%p120) target = $region12
      $region11: #{tpu_custom_call.1} parent=5 // pred_region
        %s124 = ssub.s32 %s16, 1
        // Predicated region
        $region13: #{tpu_custom_call.1} parent=11 // pred_check
          %p125 = pneg %p63
        $region14: #{tpu_custom_call.1} parent=11 // pred_check_branch
          %127 = sbr.rel (%p125) target = $region16
        $region15: #{tpu_custom_call.1} parent=11 // pred_region
          %s129 = ssub.s32 1024, 1024
          %130 = vsyncadd [#allocation6], %s129
          %s131 = sshll.u32 [#allocation5], 4
          %s132 = int_to_ptr.vmem [resolvable:$true] %s131
          %137 = dma.hbm_to_vmem [thread:$0]  %s1, 1024, %s132, [#allocation6], 256, 256, 16
        $region16: #{tpu_custom_call.1} parent=11 // pred_fallthru
          _
        // Predicated region
        $region17: #{tpu_custom_call.1} parent=11 // pred_check
          %p138 = pneg %p84
        $region18: #{tpu_custom_call.1} parent=11 // pred_check_branch
          %140 = sbr.rel (%p138) target = $region20
        $region19: #{tpu_custom_call.1} parent=11 // pred_region
          _
        $region20: #{tpu_custom_call.1} parent=11 // pred_fallthru
          _
      $region12: #{tpu_custom_call.1} parent=5 // pred_fallthru
        _
      %p141 = scmp.lt.s32.totalorder %s16, 2
      // Predicated region
      $region21: #{tpu_custom_call.1} parent=5 // pred_check
        %p142 = pneg %p141
      $region22: #{tpu_custom_call.1} parent=5 // pred_check_branch
        %144 = sbr.rel (%p142) target = $region24
      $region23: #{tpu_custom_call.1} parent=5 // pred_region
        // Predicated region
        $region25: #{tpu_custom_call.1} parent=23 // pred_check
          %p145 = pneg %p36
        $region26: #{tpu_custom_call.1} parent=23 // pred_check_branch
          %147 = sbr.rel (%p145) target = $region28
        $region27: #{tpu_custom_call.1} parent=23 // pred_region
          %s148 = sand.u32 %s26, 1
          %s149 = scalar_lea.sflag [#allocation3], %s148
          %s150 = sand.u32 %s26, 1
          %s151 = smul.addr %s150, 16
          %s152 = scalar_lea.vmem [#allocation2], %s151
          %s153 = smul.u32 2, %s16
          %s155 = ssub.s32 256, 256
          %156 = vsyncadd %s149, %s155
          %s157 = smul.addr %s153, 128
          %s158 = scalar_lea.hbm %s0, %s157
          %s159 = sshll.u32 %s152, 4
          %s160 = int_to_ptr.vmem [resolvable:$true] %s159
          %165 = dma.hbm_to_vmem [thread:$0]  %s158, 256, %s160, %s149, 128, 128, 8
        $region28: #{tpu_custom_call.1} parent=23 // pred_fallthru
          _
      $region24: #{tpu_custom_call.1} parent=5 // pred_fallthru
        _
      %p166 = scmp.le.s32.totalorder 1, %s16
      %p167 = scmp.lt.s32.totalorder %s16, 3
      %p168 = pnand %p166, %p167
      %p169 = pneg %p168
      // Predicated region
      $region29: #{tpu_custom_call.1} parent=5 // pred_check
        _
      $region30: #{tpu_custom_call.1} parent=5 // pred_check_branch
        %171 = sbr.rel (%p168) target = $region32
      $region31: #{tpu_custom_call.1} parent=5 // pred_region
        %s172 = ssub.s32 %s16, 1
        %s173 = sand.u32 %s29, 1
        %s174 = scalar_lea.sflag [#allocation3], %s173
        %s175 = sand.u32 %s29, 1
        %s176 = smul.addr %s175, 16
        %s177 = scalar_lea.vmem [#allocation2], %s176
        // Predicated region
        $region33: #{tpu_custom_call.1} parent=31 // pred_check
          %p178 = pneg %p42
        $region34: #{tpu_custom_call.1} parent=31 // pred_check_branch
          %180 = sbr.rel (%p178) target = $region36
        $region35: #{tpu_custom_call.1} parent=31 // pred_region
          %181 = dma.done %s174, 256
        $region36: #{tpu_custom_call.1} parent=31 // pred_fallthru
          _
        // Predicated region
        $region37: #{tpu_custom_call.1} parent=31 // pred_check
          %p182 = pneg %p63
        $region38: #{tpu_custom_call.1} parent=31 // pred_check_branch
          %184 = sbr.rel (%p182) target = $region40
        $region39: #{tpu_custom_call.1} parent=31 // pred_region
          %185 = dma.done [#allocation6], 1024
        $region40: #{tpu_custom_call.1} parent=31 // pred_fallthru
          _
        %s186 = sand.u32 %s29, 1
        %s187 = scalar_lea.sflag [#allocation3], %s186
        %s188 = sand.u32 %s29, 1
        %s189 = smul.addr %s188, 16
        %s190 = scalar_lea.vmem [#allocation2], %s189
        %p191 = pneg %p42
        %p192 = pneg %p39
        %p193 = pneg %p63
        %p194 = pneg %p60
        %p195 = pneg %p84
        %p196 = pneg %p81
        %p197 = pneg %p110
        %p198 = pneg %p107
        %s199 = sand.u32 %s97, 1
        %s200 = scalar_lea.sflag [#allocation4], %s199
        %s201 = sand.u32 %s97, 1
        %s202 = smul.addr %s201, 32
        %s203 = scalar_lea.vmem [#allocation7], %s202
        %s204 = smul.u32 2, %s21
        %s205 = smul.u32 2, %s21
        %v206 = vld [vmem:[%s177] sm:$0xff]
        %v207 = vld [vmem:[%s177 + $0x8] sm:$0xff]
        %v208 = vld [vmem:[#allocation5] sm:$0xff]
        %v209 = vld [vmem:[#allocation5 + $0x8] sm:$0xff]
        %v210 = vld [vmem:[#allocation5 + $0x10] sm:$0xff]
        %v211 = vld [vmem:[#allocation5 + $0x18] sm:$0xff]
        %v212 = vld [vmem:[#allocation5 + $0x20] sm:$0xff]
        %v213 = vld [vmem:[#allocation5 + $0x28] sm:$0xff]
        %v214 = vld [vmem:[#allocation5 + $0x30] sm:$0xff]
        %v215 = vld [vmem:[#allocation5 + $0x38] sm:$0xff]
        %v216 = vld [vmem:[%s2] sm:$0x3]
        %v218 = vlaneseq
        %v219 = vshrl.u32 %v218, 7
        %v220 = vsub.s32 0, %v219
        %v221 = vrot.slane %v216, %v220
        %v222 = vlaneseq
        %v223 = vshrl.u32 %v222, 7
        %v224 = vsub.s32 1, %v223
        %v225 = vrot.slane %v216, %v224
        %vm228 = vcmask 261120
        %v230 = vsel %vm228, %v206, 0
        %v233 = vsel %vm228, %v207, 0
        %235 = vmatprep.subr.mxu0 %v209
        %236 = vmatpush1.msra.mxu0 %v208
        %237 = vmatprep.subr.mxu0 %v211
        %238 = vmatpush1.msra.mxu0 %v210
        %239 = vmatprep.subr.mxu0 %v213
        %240 = vmatpush1.msra.mxu0 %v212
        %241 = vmatprep.subr.mxu0 %v215
        %242 = vmatpush1.msra.mxu0 %v214
        %243 = vmatprep.subr.mxu0 0.0
        %244 = vmatpush1.msra.mxu0 0.0
        %245 = vmatprep.subr.mxu0 0.0
        %246 = vmatpush1.msra.mxu0 0.0
        %247 = vmatprep.subr.mxu0 0.0
        %248 = vmatpush1.msra.mxu0 0.0
        %249 = vmatprep.subr.mxu0 0.0
        %250 = vmatpush1.msra.mxu0 0.0
        %251 = vmatprep.subr.mxu0 0.0
        %252 = vmatpush1.msra.mxu0 0.0
        %253 = vmatprep.subr.mxu0 0.0
        %254 = vmatpush1.msra.mxu0 0.0
        %255 = vmatprep.subr.mxu0 0.0
        %256 = vmatpush1.msra.mxu0 0.0
        %257 = vmatprep.subr.mxu0 0.0
        %258 = vmatpush1.msra.mxu0 0.0
        %259 = vmatprep.subr.mxu0 0.0
        %260 = vmatpush1.msra.mxu0 0.0
        %261 = vmatprep.subr.mxu0 0.0
        %262 = vmatpush1.msra.mxu0 0.0
        %263 = vmatprep.subr.mxu0 0.0
        %264 = vmatpush1.msra.mxu0 0.0
        %265 = vmatprep.subr.mxu0 0.0
        %266 = vmatpush1.msra.mxu0 0.0
        %267 = vmatprep.subr.mxu0 0.0
        %268 = vmatpush1.msra.mxu0 0.0
        %269 = vmatprep.subr.mxu0 0.0
        %270 = vmatpush1.msra.mxu0 0.0
        %271 = vmatprep.subr.mxu0 0.0
        %272 = vmatpush1.msra.mxu0 0.0
        %273 = vmatprep.subr.mxu0 0.0
        %274 = vmatpush1.msra.mxu0 0.0
        %275 = vmatprep.subr.mxu0 0.0
        %276 = vmatpush1.msra.mxu0 0.0
        %277 = vmatprep.subr.mxu0 0.0
        %278 = vmatpush1.msra.mxu0 0.0
        %279 = vmatprep.subr.mxu0 0.0
        %280 = vmatpush1.msra.mxu0 0.0
        %281 = vmatprep.subr.mxu0 0.0
        %282 = vmatpush1.msra.mxu0 0.0
        %283 = vmatprep.subr.mxu0 0.0
        %284 = vmatpush1.msra.mxu0 0.0
        %285 = vmatprep.subr.mxu0 0.0
        %286 = vmatpush1.msra.mxu0 0.0
        %287 = vmatprep.subr.mxu0 0.0
        %288 = vmatpush1.msra.mxu0 0.0
        %289 = vmatprep.subr.mxu0 0.0
        %290 = vmatpush1.msra.mxu0 0.0
        %291 = vmatprep.subr.mxu0 0.0
        %292 = vmatpush1.msra.mxu0 0.0
        %293 = vmatprep.subr.mxu0 0.0
        %294 = vmatpush1.msra.mxu0 0.0
        %295 = vmatprep.subr.mxu0 0.0
        %296 = vmatpush1.msra.mxu0 0.0
        %297 = vmatprep.subr.mxu0 0.0
        %298 = vmatpush1.msra.mxu0 0.0
        %299 = vmatprep.mubr.f32.mxu0 0.0
        %300 = vmatmul.mubr.f32.gmra.mrb[0].mxu0 %v230
        %v301 = vpop.f32.mrb[0].mxu0
        %v302 = vadd.f32 %v221, %v301
        %v303 = vpop.f32.mrb[0].mxu0
        %v304 = vadd.f32 %v225, %v303
        %305 = vmatprep.mubr.f32.mxu0 0.0
        %306 = vmatmul.mubr.f32.gmra.mrb[0].mxu0 %v233
        %v307 = vpop.f32.mrb[0].mxu0
        %v308 = vadd.f32 %v221, %v307
        %v309 = vpop.f32.mrb[0].mxu0
        %v310 = vadd.f32 %v225, %v309
        %311 = vdwg.mxu0
        %312 = vst [vmem:[%s203] sm:$0xff] %v302
        %313 = vst [vmem:[%s203 + $0x8] sm:$0xff] %v304
        %314 = vst [vmem:[%s203 + $0x10] sm:$0xff] %v308
        %315 = vst [vmem:[%s203 + $0x18] sm:$0xff] %v310
        %s316 = sand.u32 %s97, 1
        %s317 = scalar_lea.sflag [#allocation4], %s316
        %s318 = sand.u32 %s97, 1
        %s319 = smul.addr %s318, 32
        %s320 = scalar_lea.vmem [#allocation7], %s319
        // Predicated region
        $region41: #{tpu_custom_call.1} parent=31 // pred_check
          %p321 = pneg %p107
        $region42: #{tpu_custom_call.1} parent=31 // pred_check_branch
          %323 = sbr.rel (%p321) target = $region44
        $region43: #{tpu_custom_call.1} parent=31 // pred_region
          %s324 = smul.u32 2, %s21
          %s326 = ssub.s32 512, 512
          %327 = vsyncadd %s317, %s326
          %s328 = smul.addr %s324, 2
          %s329 = smul.addr %s328, 128
          %s330 = scalar_lea.hbm %s3, %s329
          %s331 = sshll.u32 %s320, 4
          %s332 = int_to_ptr.vmem [resolvable:$true] %s331
          %337 = dma.vmem_to_hbm [thread:$0]  %s332, 512, %s330, %s317, 256, 256, 16
        $region44: #{tpu_custom_call.1} parent=31 // pred_fallthru
          _
      $region32: #{tpu_custom_call.1} parent=5 // pred_fallthru
        _
      %p338 = scmp.le.s32.totalorder 2, %s16
      // Predicated region
      $region45: #{tpu_custom_call.1} parent=5 // pred_check
        %p339 = pneg %p338
      $region46: #{tpu_custom_call.1} parent=5 // pred_check_branch
        %341 = sbr.rel (%p339) target = $region48
      $region47: #{tpu_custom_call.1} parent=5 // pred_region
        %s342 = ssub.s32 %s16, 2
        // Predicated region
        $region49: #{tpu_custom_call.1} parent=47 // pred_check
          %p343 = pneg %p113
        $region50: #{tpu_custom_call.1} parent=47 // pred_check_branch
          %345 = sbr.rel (%p343) target = $region52
        $region51: #{tpu_custom_call.1} parent=47 // pred_region
          %s346 = sand.u32 %s98, 1
          %s347 = scalar_lea.sflag [#allocation4], %s346
          %s348 = sand.u32 %s98, 1
          %s349 = smul.addr %s348, 32
          %s350 = scalar_lea.vmem [#allocation7], %s349
          %351 = dma.done %s347, 512
        $region52: #{tpu_custom_call.1} parent=47 // pred_fallthru
          _
      $region48: #{tpu_custom_call.1} parent=5 // pred_fallthru
        _
    $region6: #{tpu_custom_call.1} parent=1 // loop_footer
      %s20 = sadd.s32 1, %s16
    $region7: #{tpu_custom_call.1} parent=1 // loop_footer_branch
      %15 = sbr.rel target = $region3
    $region8: #{tpu_custom_call.1} parent=1 // loop_exit
      _
    %352 = vsyncpa [#allocation3], 1
    %s353 = scalar_lea.sflag [#allocation3], 1
    %354 = vsyncpa %s353, 1
    %355 = vsyncpa [#allocation6], 1
    %356 = vsyncpa [#allocation4], 1
    %s357 = scalar_lea.sflag [#allocation4], 1
    %358 = vsyncpa %s357, 1

</llo_original>
